<compile_context>
chip_gen: v7x
topology: tpu7x:2x2x1
jax: 0.10.0
libtpu: 0.0.40
codegen_flags: <defaults>
</compile_context>

<pallas_src>
import jax
import jax.numpy as jnp
from jax import lax
from jax.experimental import pallas as pl
from jax.experimental.pallas import tpu as pltpu


# ---------------------------------------------------------------------------
# Pass 1: modulated-deformable-conv matmul + per-channel stats accumulation
# ---------------------------------------------------------------------------
def _dcn_matmul_kernel(cols_ref, w_ref, y_ref, sum_ref, sq_ref):
    t = pl.program_id(1)

    # (Cout, Cin*9) @ (Cin*9, hw_tile) -> (Cout, hw_tile), f32 accumulation.
    y = jnp.dot(w_ref[...], cols_ref[0], preferred_element_type=jnp.float32)
    y_ref[0] = y

    # Per-channel sum / sum-of-squares, accumulated across HW tiles in the
    # resident (same-block-index) stats outputs.
    @pl.when(t == 0)
    def _():
        sum_ref[0] = jnp.zeros_like(sum_ref[0])
        sq_ref[0] = jnp.zeros_like(sq_ref[0])

    sum_ref[0] = sum_ref[0] + jnp.sum(y, axis=1, keepdims=True)
    sq_ref[0] = sq_ref[0] + jnp.sum(y * y, axis=1, keepdims=True)


# ---------------------------------------------------------------------------
# Pass 2: apply GroupNorm as a per-channel affine (scale/shift precomputed)
# ---------------------------------------------------------------------------
def _gn_apply_kernel(y_ref, scale_ref, shift_ref, out_ref):
    out_ref[0] = y_ref[0] * scale_ref[0] + shift_ref[0]


# ---------------------------------------------------------------------------
# Plain-JAX glue: bilinear deformable sampling (im2col) — data-dependent gather
# ---------------------------------------------------------------------------
def _bilinear_sample(x, py, px):
    """x: (N, Cin, H, W); py/px: (N, K, Ho, Wo) float coords. Returns
    (N, Cin, K, Ho, Wo), zero-padded outside the image (mmcv semantics)."""
    N, Cin, H, W = x.shape
    K, Ho, Wo = py.shape[1:]
    xf = x.reshape(N, Cin, H * W)

    h0 = jnp.floor(py)
    w0 = jnp.floor(px)
    lh = py - h0
    lw = px - w0

    def corner(hi, wi):
        valid = (hi >= 0) & (hi <= H - 1) & (wi >= 0) & (wi <= W - 1)
        hc = jnp.clip(hi, 0, H - 1).astype(jnp.int32)
        wc = jnp.clip(wi, 0, W - 1).astype(jnp.int32)
        idx = (hc * W + wc).reshape(N, 1, K * Ho * Wo)
        g = jnp.take_along_axis(xf, idx, axis=2)                # (N, Cin, K*Ho*Wo)
        g = g.reshape(N, Cin, K, Ho, Wo)
        return g * valid.astype(x.dtype)[:, None]

    v00 = corner(h0, w0)
    v01 = corner(h0, w0 + 1)
    v10 = corner(h0 + 1, w0)
    v11 = corner(h0 + 1, w0 + 1)

    whh = ((1.0 - lh) * (1.0 - lw))[:, None]
    whl = ((1.0 - lh) * lw)[:, None]
    wlh = (lh * (1.0 - lw))[:, None]
    wll = (lh * lw)[:, None]
    return v00 * whh + v01 * whl + v10 * wlh + v11 * wll


def _build_columns(x, offset, mask, stride=1):
    """Deformable im2col with the modulation mask folded in.

    Returns cols of shape (N, Cin*9, Ho*Wo) — channel-major, kernel-tap minor,
    spatial last (lane-dense), matching weight.reshape(Cout, Cin*9)."""
    N, Cin, H, W = x.shape
    kh = kw = 3
    K = kh * kw
    pad = 1
    Ho = (H + 2 * pad - kh) // stride + 1
    Wo = (W + 2 * pad - kw) // stride + 1

    hout = jnp.arange(Ho, dtype=jnp.float32)
    wout = jnp.arange(Wo, dtype=jnp.float32)
    ki = jnp.repeat(jnp.arange(kh, dtype=jnp.float32), kw)      # (K,)
    kj = jnp.tile(jnp.arange(kw, dtype=jnp.float32), kh)        # (K,)
    base_y = hout[None, :, None] * stride - pad + ki[:, None, None]   # (K, Ho, 1)
    base_x = wout[None, None, :] * stride - pad + kj[:, None, None]   # (K, 1, Wo)

    # mmcv offset channel layout: [dy_0, dx_0, dy_1, dx_1, ...]
    off = offset.reshape(N, K, 2, Ho, Wo)
    py = base_y[None] + off[:, :, 0]                            # (N, K, Ho, Wo)
    px = base_x[None] + off[:, :, 1]                            # (N, K, Ho, Wo)

    sampled = _bilinear_sample(x, py, px)                       # (N, Cin, K, Ho, Wo)
    modulated = sampled * mask.reshape(N, 1, K, Ho, Wo)         # mask folded here
    cols = modulated.reshape(N, Cin * K, Ho * Wo)               # (N, Cin*9, HW)
    return cols, Ho, Wo


def _pick_hw_tile(hw, requested=None):
    if requested is not None:
        assert hw % requested == 0, "hw_tile must divide Ho*Wo"
        return requested
    for cand in (512, 384, 256, 128):                           # lane-dense, VMEM-safe
        if hw % cand == 0:
            return cand
    return hw                                                   # fallback: single tile


# ---------------------------------------------------------------------------
# Wrapper: full DyDCNv2 forward (NCHW in, NCHW out)
# ---------------------------------------------------------------------------
def dydcnv2_forward(x, offset, mask, weight, gamma, beta, *, num_groups=16,
                    stride=1, eps=1e-5, hw_tile=None):
    N, Cin, H, W = x.shape
    Cout = weight.shape[0]
    K = 9
    assert Cout % num_groups == 0
    Cg = Cout // num_groups

    cols, Ho, Wo = _build_columns(x, offset, mask, stride)      # (N, Cin*9, HW) f32
    HW = Ho * Wo
    CinK = Cin * K
    hw_tile = _pick_hw_tile(HW, hw_tile)
    n_hw = HW // hw_tile

    # bf16 MXU inputs, f32 accumulation.
    cols_bf = cols.astype(jnp.bfloat16)
    w_bf = weight.reshape(Cout, CinK).astype(jnp.bfloat16)      # (Cout, Cin*9)

    # ---------------- pass 1: conv matmul + per-channel stats ----------------
    y, ch_sum, ch_sq = pl.pallas_call(
        _dcn_matmul_kernel,
        out_shape=(
            jax.ShapeDtypeStruct((N, Cout, HW), jnp.float32),
            jax.ShapeDtypeStruct((N, Cout, 1), jnp.float32),
            jax.ShapeDtypeStruct((N, Cout, 1), jnp.float32),
        ),
        grid_spec=pltpu.PrefetchScalarGridSpec(
            num_scalar_prefetch=0,
            grid=(N, n_hw),
            in_specs=[
                pl.BlockSpec((1, CinK, hw_tile), lambda n, t: (n, 0, t)),
                pl.BlockSpec((Cout, CinK), lambda n, t: (0, 0)),
            ],
            out_specs=[
                pl.BlockSpec((1, Cout, hw_tile), lambda n, t: (n, 0, t)),
                pl.BlockSpec((1, Cout, 1), lambda n, t: (n, 0, 0)),
                pl.BlockSpec((1, Cout, 1), lambda n, t: (n, 0, 0)),
            ],
        ),
        compiler_params=pltpu.CompilerParams(
            dimension_semantics=("parallel", "arbitrary")),
    )(cols_bf, w_bf)

    # ---------------- tiny JAX glue: per-group stats -> per-channel affine ---
    s = ch_sum[..., 0]                                          # (N, Cout)
    sq = ch_sq[..., 0]                                          # (N, Cout)
    count = float(Cg * HW)
    mean_g = s.reshape(N, num_groups, Cg).sum(-1) / count       # (N, G)
    ex2_g = sq.reshape(N, num_groups, Cg).sum(-1) / count       # (N, G)
    var_g = ex2_g - mean_g * mean_g                             # biased, like GN
    inv_g = lax.rsqrt(var_g + eps)
    mean = jnp.repeat(mean_g, Cg, axis=1)                       # (N, Cout)
    inv = jnp.repeat(inv_g, Cg, axis=1)                         # (N, Cout)
    scale = (inv * gamma[None, :]).astype(jnp.float32)[..., None]          # (N, Cout, 1)
    shift = (beta[None, :] - mean * inv * gamma[None, :]).astype(
        jnp.float32)[..., None]                                            # (N, Cout, 1)

    # ---------------- pass 2: apply GroupNorm affine --------------------------
    out = pl.pallas_call(
        _gn_apply_kernel,
        out_shape=jax.ShapeDtypeStruct((N, Cout, HW), jnp.float32),
        grid_spec=pltpu.PrefetchScalarGridSpec(
            num_scalar_prefetch=0,
            grid=(N, n_hw),
            in_specs=[
                pl.BlockSpec((1, Cout, hw_tile), lambda n, t: (n, 0, t)),
                pl.BlockSpec((1, Cout, 1), lambda n, t: (n, 0, 0)),
                pl.BlockSpec((1, Cout, 1), lambda n, t: (n, 0, 0)),
            ],
            out_specs=pl.BlockSpec((1, Cout, hw_tile), lambda n, t: (n, 0, t)),
        ),
        compiler_params=pltpu.CompilerParams(
            dimension_semantics=("parallel", "parallel")),
    )(y, scale, shift)

    # Already channel-major / spatial-minor -> NCHW with a pure reshape.
    return out.reshape(N, Cout, Ho, Wo)


# ---------------------------------------------------------------------------
# Pure-JAX reference (mirrors the kernel's bf16-input / f32-accumulate matmul)
# ---------------------------------------------------------------------------
def dydcnv2_reference(x, offset, mask, weight, gamma, beta, *, num_groups=16,
                      stride=1, eps=1e-5):
    N, Cin, H, W = x.shape
    Cout = weight.shape[0]
    K = 9
    Cg = Cout // num_groups
    cols, Ho, Wo = _build_columns(x, offset, mask, stride)      # (N, Cin*9, HW)
    HW = Ho * Wo

    # Same quantization as the kernel: bf16 operands, f32 accumulation.
    w_q = weight.reshape(Cout, Cin * K).astype(jnp.bfloat16).astype(jnp.float32)
    cols_q = cols.astype(jnp.bfloat16).astype(jnp.float32)
    y = jnp.einsum('ok,nkp->nop', w_q, cols_q)                  # (N, Cout, HW) f32

    yg = y.reshape(N, num_groups, Cg, HW)
    mean = yg.mean(axis=(2, 3), keepdims=True)
    ex2 = (yg * yg).mean(axis=(2, 3), keepdims=True)
    var = ex2 - mean * mean
    yn = ((yg - mean) * lax.rsqrt(var + eps)).reshape(N, Cout, HW)
    yn = yn * gamma.reshape(1, Cout, 1) + beta.reshape(1, Cout, 1)
    return yn.reshape(N, Cout, Ho, Wo)


if __name__ == "__main__":
    key = jax.random.PRNGKey(0)
    k_x, k_off, k_mask, k_w, k_g, k_b = jax.random.split(key, 6)

    N, Cin, Cout, H, W = 2, 16, 32, 16, 16
    num_groups = 16  # default GN config in DyDCNv2

    x = jax.random.normal(k_x, (N, Cin, H, W), dtype=jnp.float32)
    offset = 0.5 * jax.random.normal(k_off, (N, 18, H, W), dtype=jnp.float32)
    mask = jax.nn.sigmoid(jax.random.normal(k_mask, (N, 9, H, W),
                                            dtype=jnp.float32))
    weight = 0.05 * jax.random.normal(k_w, (Cout, Cin, 3, 3), dtype=jnp.float32)
    gamma = 1.0 + 0.1 * jax.random.normal(k_g, (Cout,), dtype=jnp.float32)
    beta = 0.1 * jax.random.normal(k_b, (Cout,), dtype=jnp.float32)

    # hw_tile=128 -> 2 spatial tiles: exercises the tiled / stats-accumulation
    # path even at this toy shape (default picks the largest tile <= 512).
    out = dydcnv2_forward(x, offset, mask, weight, gamma, beta,
                          num_groups=num_groups, hw_tile=128)
    out = jax.block_until_ready(out)

    ref = dydcnv2_reference(x, offset, mask, weight, gamma, beta,
                            num_groups=num_groups)
    assert out.shape == (N, Cout, H, W)
    assert jnp.allclose(out, ref, rtol=1e-4, atol=1e-4), (
        float(jnp.max(jnp.abs(out - ref))))

    print("KERNEL_OK")
</pallas_src>

<mosaic_0001>
module attributes {stable_mosaic.version = 11 : i64} {
  func.func @_dcn_matmul_kernel(%arg0: i32, %arg1: i32, %arg2: memref<1x144x128xbf16, #tpu.memory_space<vmem>>, %arg3: memref<32x144xbf16, #tpu.memory_space<vmem>>, %arg4: memref<1x32x128xf32, #tpu.memory_space<vmem>>, %arg5: memref<1x32x1xf32, #tpu.memory_space<vmem>>, %arg6: memref<1x32x1xf32, #tpu.memory_space<vmem>>) attributes {dimension_semantics = [#tpu.dimension_semantics<parallel>, #tpu.dimension_semantics<arbitrary>], iteration_bounds = array<i64: 2, 2>, scalar_prefetch = 0 : i64, scratch_operands = 0 : i64, tpu.core_type = #tpu.core_type<tc>, window_params = [{transform_indices = @transform_0, window_bounds = array<i64: 1, 144, 128>}, {pipeline_mode = #tpu.pipeline_mode<synchronous>, transform_indices = @transform_1, window_bounds = array<i64: 32, 144>}, {transform_indices = @transform_2, window_bounds = array<i64: 1, 32, 128>}, {transform_indices = @transform_3, window_bounds = array<i64: 1, 32, 1>}, {transform_indices = @transform_4, window_bounds = array<i64: 1, 32, 1>}]} {
    %c0 = arith.constant 0 : index
    %c0_0 = arith.constant 0 : index
    %0 = vector.load %arg3[%c0, %c0_0] : memref<32x144xbf16, #tpu.memory_space<vmem>>, vector<32x144xbf16>
    %c0_1 = arith.constant 0 : index
    %c0_2 = arith.constant 0 : index
    %c0_3 = arith.constant 0 : index
    %1 = vector.load %arg2[%c0_1, %c0_2, %c0_3] : memref<1x144x128xbf16, #tpu.memory_space<vmem>>, vector<1x144x128xbf16>
    %2 = vector.shape_cast %1 : vector<1x144x128xbf16> to vector<144x128xbf16>
    %cst = arith.constant dense<0.000000e+00> : vector<32x128xf32>
    %3 = tpu.matmul %0, %2, %cst {dimension_numbers = #tpu.dot_dimension_numbers<[1], [0], [0], [1], [0, 0, 1, 1], [], []>} : vector<32x144xbf16>, vector<144x128xbf16>, vector<32x128xf32> -> vector<32x128xf32>
    %c0_4 = arith.constant 0 : index
    %c0_5 = arith.constant 0 : index
    %c0_6 = arith.constant 0 : index
    %4 = vector.load %arg4[%c0_4, %c0_5, %c0_6] : memref<1x32x128xf32, #tpu.memory_space<vmem>>, vector<1x32x128xf32>
    %5 = vector.shape_cast %4 : vector<1x32x128xf32> to vector<32x128xf32>
    %6 = vector.shape_cast %3 : vector<32x128xf32> to vector<1x32x128xf32>
    tpu.vector_store %arg4[%c0_4, %c0_5, %c0_6], %6 {strides = array<i32>} : memref<1x32x128xf32, #tpu.memory_space<vmem>>, vector<1x32x128xf32>,
    %c0_i32 = arith.constant 0 : i32
    %7 = arith.cmpi eq, %arg1, %c0_i32 : i32
    %8 = arith.extui %7 : i1 to i32
    %c0_i32_7 = arith.constant 0 : i32
    %9 = arith.cmpi ne, %8, %c0_i32_7 : i32
    scf.if %9 {
      %cst_22 = arith.constant 0.000000e+00 : f32
      %27 = vector.broadcast %cst_22 : f32 to vector<32x1xf32>
      %c0_23 = arith.constant 0 : index
      %c0_24 = arith.constant 0 : index
      %c0_25 = arith.constant 0 : index
      %28 = vector.load %arg5[%c0_23, %c0_24, %c0_25] : memref<1x32x1xf32, #tpu.memory_space<vmem>>, vector<1x32x1xf32>
      %29 = vector.shape_cast %28 : vector<1x32x1xf32> to vector<32x1xf32>
      %30 = vector.shape_cast %27 : vector<32x1xf32> to vector<1x32x1xf32>
      tpu.vector_store %arg5[%c0_23, %c0_24, %c0_25], %30 {strides = array<i32>} : memref<1x32x1xf32, #tpu.memory_space<vmem>>, vector<1x32x1xf32>,
      %cst_26 = arith.constant 0.000000e+00 : f32
      %31 = vector.broadcast %cst_26 : f32 to vector<32x1xf32>
      %c0_27 = arith.constant 0 : index
      %c0_28 = arith.constant 0 : index
      %c0_29 = arith.constant 0 : index
      %32 = vector.load %arg6[%c0_27, %c0_28, %c0_29] : memref<1x32x1xf32, #tpu.memory_space<vmem>>, vector<1x32x1xf32>
      %33 = vector.shape_cast %32 : vector<1x32x1xf32> to vector<32x1xf32>
      %34 = vector.shape_cast %31 : vector<32x1xf32> to vector<1x32x1xf32>
      tpu.vector_store %arg6[%c0_27, %c0_28, %c0_29], %34 {strides = array<i32>} : memref<1x32x1xf32, #tpu.memory_space<vmem>>, vector<1x32x1xf32>,
    } else {
    }
    %c0_8 = arith.constant 0 : index
    %c0_9 = arith.constant 0 : index
    %c0_10 = arith.constant 0 : index
    %10 = vector.load %arg5[%c0_8, %c0_9, %c0_10] : memref<1x32x1xf32, #tpu.memory_space<vmem>>, vector<1x32x1xf32>
    %11 = vector.shape_cast %10 : vector<1x32x1xf32> to vector<32x1xf32>
    %cst_11 = arith.constant dense<0.000000e+00> : vector<32xf32>
    %12 = vector.multi_reduction <add>, %3, %cst_11 [1] : vector<32x128xf32> to vector<32xf32>
    %13 = vector.shape_cast %12 : vector<32xf32> to vector<32x1xf32>
    %14 = arith.addf %11, %13 : vector<32x1xf32>
    %c0_12 = arith.constant 0 : index
    %c0_13 = arith.constant 0 : index
    %c0_14 = arith.constant 0 : index
    %15 = vector.load %arg5[%c0_12, %c0_13, %c0_14] : memref<1x32x1xf32, #tpu.memory_space<vmem>>, vector<1x32x1xf32>
    %16 = vector.shape_cast %15 : vector<1x32x1xf32> to vector<32x1xf32>
    %17 = vector.shape_cast %14 : vector<32x1xf32> to vector<1x32x1xf32>
    tpu.vector_store %arg5[%c0_12, %c0_13, %c0_14], %17 {strides = array<i32>} : memref<1x32x1xf32, #tpu.memory_space<vmem>>, vector<1x32x1xf32>,
    %c0_15 = arith.constant 0 : index
    %c0_16 = arith.constant 0 : index
    %c0_17 = arith.constant 0 : index
    %18 = vector.load %arg6[%c0_15, %c0_16, %c0_17] : memref<1x32x1xf32, #tpu.memory_space<vmem>>, vector<1x32x1xf32>
    %19 = vector.shape_cast %18 : vector<1x32x1xf32> to vector<32x1xf32>
    %20 = arith.mulf %3, %3 : vector<32x128xf32>
    %cst_18 = arith.constant dense<0.000000e+00> : vector<32xf32>
    %21 = vector.multi_reduction <add>, %20, %cst_18 [1] : vector<32x128xf32> to vector<32xf32>
    %22 = vector.shape_cast %21 : vector<32xf32> to vector<32x1xf32>
    %23 = arith.addf %19, %22 : vector<32x1xf32>
    %c0_19 = arith.constant 0 : index
    %c0_20 = arith.constant 0 : index
    %c0_21 = arith.constant 0 : index
    %24 = vector.load %arg6[%c0_19, %c0_20, %c0_21] : memref<1x32x1xf32, #tpu.memory_space<vmem>>, vector<1x32x1xf32>
    %25 = vector.shape_cast %24 : vector<1x32x1xf32> to vector<32x1xf32>
    %26 = vector.shape_cast %23 : vector<32x1xf32> to vector<1x32x1xf32>
    tpu.vector_store %arg6[%c0_19, %c0_20, %c0_21], %26 {strides = array<i32>} : memref<1x32x1xf32, #tpu.memory_space<vmem>>, vector<1x32x1xf32>,
    return
  }
  func.func @transform_0(%arg0: i32, %arg1: i32) -> (i32, i32, i32) {
    %c0_i32 = arith.constant 0 : i32
    %c0_i32_0 = arith.constant 0 : i32
    return %arg0, %c0_i32, %arg1 : i32, i32, i32
  }
  func.func @transform_1(%arg0: i32, %arg1: i32) -> (i32, i32) {
    %c0_i32 = arith.constant 0 : i32
    %c0_i32_0 = arith.constant 0 : i32
    %c0_i32_1 = arith.constant 0 : i32
    return %c0_i32, %c0_i32_0 : i32, i32
  }
  func.func @transform_2(%arg0: i32, %arg1: i32) -> (i32, i32, i32) {
    %c0_i32 = arith.constant 0 : i32
    %c0_i32_0 = arith.constant 0 : i32
    return %arg0, %c0_i32, %arg1 : i32, i32, i32
  }
  func.func @transform_3(%arg0: i32, %arg1: i32) -> (i32, i32, i32) {
    %c0_i32 = arith.constant 0 : i32
    %c0_i32_0 = arith.constant 0 : i32
    %c0_i32_1 = arith.constant 0 : i32
    return %arg0, %c0_i32, %c0_i32_0 : i32, i32, i32
  }
  func.func @transform_4(%arg0: i32, %arg1: i32) -> (i32, i32, i32) {
    %c0_i32 = arith.constant 0 : i32
    %c0_i32_0 = arith.constant 0 : i32
    %c0_i32_1 = arith.constant 0 : i32
    return %arg0, %c0_i32, %c0_i32_0 : i32, i32, i32
  }
}

</mosaic_0001>

<llo_original>
// kernel: tpu_custom_call.1
$region0: #{tpu_custom_call.1}
  #allocation0 [shape = 'u32[]', space=smem, size = 0x4, offset = 0x4, fixed_abs, tag = 'smem constant byte address 0x4 - core index']
  #allocation1 [shape = 'u32[144,128]{1,0:T(1,128)}', space=vmem, size = 0x12000, scoped, tag = 'internal scratch']
  %s0 = inlined_call_operand.hbm [shape: bf16[2,144,256], index: 0, kind: input, shape index: {}]
  %s1 = inlined_call_operand.hbm [shape: bf16[32,144], index: 1, kind: input, shape index: {}]
  %s2 = inlined_call_operand.hbm [shape: f32[2,32,256], index: 2, kind: output, shape index: {0}]
  %s3 = inlined_call_operand.vmem [shape: f32[2,32,1], index: 3, kind: output, shape index: {1}]
  %s4 = inlined_call_operand.vmem [shape: f32[2,32,1], index: 4, kind: output, shape index: {2}]
  %5 = xla_tuple %s2, %s3, %s4
  %s6 = sld [smem:[#allocation0]]
  $region69: #{tpu_custom_call.1} parent=0
    _
  %s8 = ssub.s32 1, %s6
  %s9 = scalar_select 0, %s8, %s6
  $region1: #{tpu_custom_call.1} parent=0
    #allocation2 [shape = 'u8[73728]{0}', space=vmem, size = 0x12000, scoped, tag = 'input window, operand 0']
    #allocation3 [shape = 's32[2]{0}', space=sflag, size = 0x8, scoped, tag = 'scoped memory for tpu_custom_call.1']
    #allocation4 [shape = 's32[2]{0}', space=sflag, size = 0x8, scoped, tag = 'scoped memory for tpu_custom_call.1']
    #allocation5 [shape = 'u8[16384]{0}', space=vmem, size = 0x4000, scoped, tag = 'input window, operand 1, single buffered']
    #allocation6 [shape = 's32[1]{0}', space=sflag, size = 0x4, scoped, tag = 'scoped memory for tpu_custom_call.1']
    #allocation7 [shape = 'u8[32768]{0}', space=vmem, size = 0x8000, scoped, tag = 'output window, operand 0']
    %10 = vsyncpa [#allocation3], 0
    %s11 = scalar_lea.sflag [#allocation3], 1
    %12 = vsyncpa %s11, 0
    %13 = vsyncpa [#allocation6], 0
    %14 = vsyncpa [#allocation4], 0
    %s15 = scalar_lea.sflag [#allocation4], 1
    %16 = vsyncpa %s15, 0
    loop: start=0, step=1, limit=6
    $region2: #{tpu_custom_call.1} parent=1 // loop_pre_header
      _
    $region3: #{tpu_custom_call.1} parent=1 // loop_header
      %s18 = sphi 0, %s22
      %p19 = scmp.ge.s32.totalorder %s18, 6
      %s25 = sphi 0, %s37
      %s26 = sphi 0, %s33
      %s27 = sphi 0, %s25
      %s28 = sphi 0, %s26
      %s29 = sphi 0, %s27
      %s30 = sphi 0, %s28
      %s42 = sphi 0, %s44
      %s45 = sphi 0, %s42
      %s46 = sphi 0, %s45
      %s62 = sphi 0, %s46
      %s66 = sphi 0, %s66
      %s68 = sphi 0, %s66
      %s69 = sphi 0, %s68
      %s83 = sphi 0, %s69
      %s91 = sphi 0, %s93
      %s94 = sphi 0, %s91
      %s95 = sphi 0, %s94
      %s111 = sphi 0, %s95
      %s117 = sphi 0, %s119
      %s120 = sphi 0, %s117
      %s121 = sphi 0, %s120
      %s137 = sphi 0, %s121
      %s143 = sphi 0, %s145
      %s146 = sphi 0, %s143
      %s147 = sphi 0, %s146
      %s163 = sphi 0, %s147
    $region4: #{tpu_custom_call.1} parent=1 // loop_header_branch
      %21 = sbr.rel (%p19) target = $region8
    $region5: #{tpu_custom_call.1} parent=1 // loop_body
      %s23 = ssub.s32 %s18, 1
      %s24 = ssub.s32 %s18, 2
      %s31 = sadd.s32 1, %s26
      %p32 = scmp.ge.s32.totalorder %s31, 2
      %s33 = scalar_select %p32, 0, %s31
      %s34 = sadd.s32 1, %s25
      %s35 = scalar_select %p32, %s34, %s25
      %p36 = scmp.ge.s32.totalorder %s35, 2
      %s37 = scalar_select %p36, 0, %s35
      %s38 = ssub.s32 %s25, %s37
      %s39 = ssub.s32 %s26, %s33
      %s40 = sor.u32 %s38, %s39
      %p41 = scmp.eq.s32.totalorder %s40, 0
      %s43 = sadd.s32 %s42, 1
      %s44 = scalar_select %p41, %s42, %s43
      %p47 = pneg %p41
      %p48 = scmp.eq.s32.totalorder %s18, 3
      %p49 = por %p47, %p48
      %p50 = scmp.ne.s32.totalorder %s42, %s45
      %p51 = scmp.eq.s32.totalorder %s18, 0
      %p52 = por %p50, %p51
      %p53 = scmp.ne.s32.totalorder %s42, %s45
      %p54 = scmp.eq.s32.totalorder %s23, 3
      %p55 = por %p53, %p54
      %p56 = scmp.ne.s32.totalorder %s45, %s46
      %p57 = scmp.eq.s32.totalorder %s23, 0
      %p58 = por %p56, %p57
      %p59 = scmp.ne.s32.totalorder %s45, %s46
      %p60 = scmp.eq.s32.totalorder %s24, 3
      %p61 = por %p59, %p60
      %p63 = scmp.ne.s32.totalorder %s46, %s62
      %p64 = scmp.eq.s32.totalorder %s24, 0
      %p65 = por %p63, %p64
      %s67 = sadd.s32 %s66, 1
      %p70 = scmp.eq.s32.totalorder %s18, 3
      %p71 = scmp.ne.s32.totalorder %s66, %s68
      %p72 = scmp.eq.s32.totalorder %s18, 0
      %p73 = por %p71, %p72
      %p74 = scmp.ne.s32.totalorder %s66, %s68
      %p75 = scmp.eq.s32.totalorder %s23, 3
      %p76 = por %p74, %p75
      %p77 = scmp.ne.s32.totalorder %s68, %s69
      %p78 = scmp.eq.s32.totalorder %s23, 0
      %p79 = por %p77, %p78
      %p80 = scmp.ne.s32.totalorder %s68, %s69
      %p81 = scmp.eq.s32.totalorder %s24, 3
      %p82 = por %p80, %p81
      %p84 = scmp.ne.s32.totalorder %s69, %s83
      %p85 = scmp.eq.s32.totalorder %s24, 0
      %p86 = por %p84, %p85
      %s87 = ssub.s32 %s25, %s37
      %s88 = ssub.s32 %s26, %s33
      %s89 = sor.u32 %s87, %s88
      %p90 = scmp.eq.s32.totalorder %s89, 0
      %s92 = sadd.s32 %s91, 1
      %s93 = scalar_select %p90, %s91, %s92
      %p96 = pneg %p90
      %p97 = scmp.eq.s32.totalorder %s18, 3
      %p98 = por %p96, %p97
      %p99 = scmp.ne.s32.totalorder %s91, %s94
      %p100 = scmp.eq.s32.totalorder %s18, 0
      %p101 = por %p99, %p100
      %p102 = scmp.ne.s32.totalorder %s91, %s94
      %p103 = scmp.eq.s32.totalorder %s23, 3
      %p104 = por %p102, %p103
      %p105 = scmp.ne.s32.totalorder %s94, %s95
      %p106 = scmp.eq.s32.totalorder %s23, 0
      %p107 = por %p105, %p106
      %p108 = scmp.ne.s32.totalorder %s94, %s95
      %p109 = scmp.eq.s32.totalorder %s24, 3
      %p110 = por %p108, %p109
      %p112 = scmp.ne.s32.totalorder %s95, %s111
      %p113 = scmp.eq.s32.totalorder %s24, 0
      %p114 = por %p112, %p113
      %s115 = ssub.s32 %s25, %s37
      %p116 = scmp.eq.s32.totalorder %s115, 0
      %s118 = sadd.s32 %s117, 1
      %s119 = scalar_select %p116, %s117, %s118
      %p122 = pneg %p116
      %p123 = scmp.eq.s32.totalorder %s18, 3
      %p124 = por %p122, %p123
      %p125 = scmp.ne.s32.totalorder %s117, %s120
      %p126 = scmp.eq.s32.totalorder %s18, 0
      %p127 = por %p125, %p126
      %p128 = scmp.ne.s32.totalorder %s117, %s120
      %p129 = scmp.eq.s32.totalorder %s23, 3
      %p130 = por %p128, %p129
      %p131 = scmp.ne.s32.totalorder %s120, %s121
      %p132 = scmp.eq.s32.totalorder %s23, 0
      %p133 = por %p131, %p132
      %p134 = scmp.ne.s32.totalorder %s120, %s121
      %p135 = scmp.eq.s32.totalorder %s24, 3
      %p136 = por %p134, %p135
      %p138 = scmp.ne.s32.totalorder %s121, %s137
      %p139 = scmp.eq.s32.totalorder %s24, 0
      %p140 = por %p138, %p139
      %s141 = ssub.s32 %s25, %s37
      %p142 = scmp.eq.s32.totalorder %s141, 0
      %s144 = sadd.s32 %s143, 1
      %s145 = scalar_select %p142, %s143, %s144
      %p148 = pneg %p142
      %p149 = scmp.eq.s32.totalorder %s18, 3
      %p150 = por %p148, %p149
      %p151 = scmp.ne.s32.totalorder %s143, %s146
      %p152 = scmp.eq.s32.totalorder %s18, 0
      %p153 = por %p151, %p152
      %p154 = scmp.ne.s32.totalorder %s143, %s146
      %p155 = scmp.eq.s32.totalorder %s23, 3
      %p156 = por %p154, %p155
      %p157 = scmp.ne.s32.totalorder %s146, %s147
      %p158 = scmp.eq.s32.totalorder %s23, 0
      %p159 = por %p157, %p158
      %p160 = scmp.ne.s32.totalorder %s146, %s147
      %p161 = scmp.eq.s32.totalorder %s24, 3
      %p162 = por %p160, %p161
      %p164 = scmp.ne.s32.totalorder %s147, %s163
      %p165 = scmp.eq.s32.totalorder %s24, 0
      %p166 = por %p164, %p165
      %p167 = scmp.le.s32.totalorder 1, %s18
      %p168 = scmp.lt.s32.totalorder %s18, 5
      %p169 = pnand %p167, %p168
      %p170 = pneg %p169
      // Predicated region
      $region9: #{tpu_custom_call.1} parent=5 // pred_check
        _
      $region10: #{tpu_custom_call.1} parent=5 // pred_check_branch
        %172 = sbr.rel (%p169) target = $region12
      $region11: #{tpu_custom_call.1} parent=5 // pred_region
        %s173 = ssub.s32 %s18, 1
        // Predicated region
        $region13: #{tpu_custom_call.1} parent=11 // pred_check
          %p174 = pneg %p79
        $region14: #{tpu_custom_call.1} parent=11 // pred_check_branch
          %176 = sbr.rel (%p174) target = $region16
        $region15: #{tpu_custom_call.1} parent=11 // pred_region
          %s178 = ssub.s32 512, 512
          %179 = vsyncadd [#allocation6], %s178
          %s180 = sshll.u32 [#allocation5], 4
          %s181 = int_to_ptr.vmem [resolvable:$true] %s180
          %186 = dma.hbm_to_vmem [thread:$0]  %s1, 512, %s181, [#allocation6], 128, 128, 8
        $region16: #{tpu_custom_call.1} parent=11 // pred_fallthru
          _
      $region12: #{tpu_custom_call.1} parent=5 // pred_fallthru
        _
      %p187 = scmp.lt.s32.totalorder %s18, 4
      // Predicated region
      $region17: #{tpu_custom_call.1} parent=5 // pred_check
        %p188 = pneg %p187
      $region18: #{tpu_custom_call.1} parent=5 // pred_check_branch
        %190 = sbr.rel (%p188) target = $region20
      $region19: #{tpu_custom_call.1} parent=5 // pred_region
        // Predicated region
        $region21: #{tpu_custom_call.1} parent=19 // pred_check
          %p191 = pneg %p52
        $region22: #{tpu_custom_call.1} parent=19 // pred_check_branch
          %193 = sbr.rel (%p191) target = $region24
        $region23: #{tpu_custom_call.1} parent=19 // pred_region
          %s194 = sand.u32 %s42, 1
          %s195 = scalar_lea.sflag [#allocation3], %s194
          %s196 = sand.u32 %s42, 1
          %s197 = smul.addr %s196, 72
          %s198 = scalar_lea.vmem [#allocation2], %s197
          %s200 = ssub.s32 1152, 1152
          %201 = vsyncadd %s195, %s200
          %s202 = smul.addr %s25, 36
          %s203 = sadd.s32 %s26, %s202
          %s204 = smul.addr %s203, 64
          %s205 = scalar_lea.hbm %s0, %s204
          %s206 = sshll.u32 %s198, 4
          %s207 = int_to_ptr.vmem [resolvable:$true] %s206
          %212 = dma.hbm_to_vmem [thread:$0]  %s205, 1152, %s207, %s195, 128, 64, 4
        $region24: #{tpu_custom_call.1} parent=19 // pred_fallthru
          _
      $region20: #{tpu_custom_call.1} parent=5 // pred_fallthru
        _
      %p213 = scmp.le.s32.totalorder 1, %s18
      %p214 = scmp.lt.s32.totalorder %s18, 5
      %p215 = pnand %p213, %p214
      %p216 = pneg %p215
      // Predicated region
      $region25: #{tpu_custom_call.1} parent=5 // pred_check
        _
      $region26: #{tpu_custom_call.1} parent=5 // pred_check_branch
        %218 = sbr.rel (%p215) target = $region28
      $region27: #{tpu_custom_call.1} parent=5 // pred_region
        %s219 = ssub.s32 %s18, 1
        %s220 = sand.u32 %s45, 1
        %s221 = scalar_lea.sflag [#allocation3], %s220
        %s222 = sand.u32 %s45, 1
        %s223 = smul.addr %s222, 72
        %s224 = scalar_lea.vmem [#allocation2], %s223
        // Predicated region
        $region29: #{tpu_custom_call.1} parent=27 // pred_check
          %p225 = pneg %p58
        $region30: #{tpu_custom_call.1} parent=27 // pred_check_branch
          %227 = sbr.rel (%p225) target = $region32
        $region31: #{tpu_custom_call.1} parent=27 // pred_region
          %228 = dma.done %s221, 1152
        $region32: #{tpu_custom_call.1} parent=27 // pred_fallthru
          _
        // Predicated region
        $region33: #{tpu_custom_call.1} parent=27 // pred_check
          %p229 = pneg %p79
        $region34: #{tpu_custom_call.1} parent=27 // pred_check_branch
          %231 = sbr.rel (%p229) target = $region36
        $region35: #{tpu_custom_call.1} parent=27 // pred_region
          %232 = dma.done [#allocation6], 512
        $region36: #{tpu_custom_call.1} parent=27 // pred_fallthru
          _
        %s233 = sand.u32 %s45, 1
        %s234 = scalar_lea.sflag [#allocation3], %s233
        %s235 = sand.u32 %s45, 1
        %s236 = smul.addr %s235, 72
        %s237 = scalar_lea.vmem [#allocation2], %s236
        %p238 = pneg %p58
        %p239 = pneg %p55
        %p240 = pneg %p79
        %p241 = pneg %p76
        %p242 = pneg %p107
        %p243 = pneg %p104
        %s244 = sand.u32 %s94, 1
        %s245 = scalar_lea.sflag [#allocation4], %s244
        %s246 = sand.u32 %s94, 1
        %s247 = smul.addr %s246, 32
        %s248 = scalar_lea.vmem [#allocation7], %s247
        %p249 = pneg %p133
        %p250 = pneg %p130
        %p251 = scmp.lt.s32.totalorder %s27, 1
        %s252 = scalar_select %p251, %s27, 1
        %s253 = smul.addr %s252, 4
        %s254 = smul.addr %s253, 8
        %s255 = scalar_lea.vmem %s3, %s254
        %p256 = pneg %p159
        %p257 = pneg %p156
        %p258 = scmp.lt.s32.totalorder %s27, 1
        %s259 = scalar_select %p258, %s27, 1
        %s260 = smul.addr %s259, 4
        %s261 = smul.addr %s260, 8
        %s262 = scalar_lea.vmem %s4, %s261
        %p263 = scmp.lt.s32.totalorder %s27, 1
        %s264 = scalar_select %p263, %s27, 1
        %s265 = smul.addr %s264, 4
        %s266 = smul.addr %s265, 8
        %s267 = scalar_lea.vmem %s3, %s266
        %p268 = scmp.lt.s32.totalorder %s27, 1
        %s269 = scalar_select %p268, %s27, 1
        %s270 = smul.addr %s269, 4
        %s271 = smul.addr %s270, 8
        %s272 = scalar_lea.vmem %s4, %s271
        %v274 = vld [vmem:[#allocation5] sm:$0xff]
        %v275 = vld [vmem:[#allocation5 + $0x8] sm:$0xff]
        %v276 = vld [vmem:[#allocation5 + $0x10] sm:$0xff]
        %v277 = vld [vmem:[#allocation5 + $0x18] sm:$0xff]
        %v278 = vld [vmem:[%s224] sm:$0xf]
        %v279 = vld [vmem:[%s224 + $0x4] sm:$0xf]
        %v280 = vld [vmem:[%s224 + $0x8] sm:$0xf]
        %v281 = vld [vmem:[%s224 + $0xc] sm:$0xf]
        %v282 = vld [vmem:[%s224 + $0x10] sm:$0xf]
        %v283 = vld [vmem:[%s224 + $0x14] sm:$0xf]
        %v284 = vld [vmem:[%s224 + $0x18] sm:$0xf]
        %v285 = vld [vmem:[%s224 + $0x1c] sm:$0xf]
        %v286 = vld [vmem:[%s224 + $0x20] sm:$0xf]
        %v287 = vld [vmem:[%s224 + $0x24] sm:$0xf]
        %v288 = vld [vmem:[%s224 + $0x28] sm:$0xf]
        %v289 = vld [vmem:[%s224 + $0x2c] sm:$0xf]
        %v290 = vld [vmem:[%s224 + $0x30] sm:$0xf]
        %v291 = vld [vmem:[%s224 + $0x34] sm:$0xf]
        %v292 = vld [vmem:[%s224 + $0x38] sm:$0xf]
        %v293 = vld [vmem:[%s224 + $0x3c] sm:$0xf]
        %v294 = vld [vmem:[%s224 + $0x40] sm:$0xf]
        %v295 = vld [vmem:[%s224 + $0x44] sm:$0xf]
        %v300 = vunpack.c.l.b16 %v274
        %v301 = vunpack.c.h.b16 %v274
        %v302 = vunpack.c.l.b16 %v275
        %v303 = vunpack.c.h.b16 %v275
        %v304 = vunpack.c.l.b16 %v276
        %v305 = vunpack.c.h.b16 %v276
        %v306 = vunpack.c.l.b16 %v277
        %v307 = vunpack.c.h.b16 %v277
        %v308 = vpack.c.b16 %v302, %v300
        %v309 = vpack.c.b16 %v303, %v301
        %v310 = vpack.c.b16 %v306, %v304
        %v311 = vpack.c.b16 %v307, %v305
        %v332 = vunpack.c.l.b16 %v278
        %v333 = vunpack.c.l.b16 %v279
        %v334 = vunpack.c.l.b16 %v280
        %v335 = vunpack.c.l.b16 %v281
        %v336 = vunpack.c.l.b16 %v282
        %v337 = vunpack.c.l.b16 %v283
        %v338 = vunpack.c.l.b16 %v284
        %v339 = vunpack.c.l.b16 %v285
        %v340 = vunpack.c.l.b16 %v286
        %v341 = vunpack.c.l.b16 %v287
        %v342 = vunpack.c.l.b16 %v288
        %v343 = vunpack.c.l.b16 %v289
        %v344 = vunpack.c.l.b16 %v290
        %v345 = vunpack.c.l.b16 %v291
        %v346 = vunpack.c.l.b16 %v292
        %v347 = vunpack.c.l.b16 %v293
        %v348 = vunpack.c.l.b16 %v294
        %v349 = vunpack.c.l.b16 %v295
        %v350 = vpack.c.b16 %v333, %v332
        %v351 = vpack.c.b16 %v335, %v334
        %v352 = vpack.c.b16 %v337, %v336
        %v353 = vpack.c.b16 %v339, %v338
        %v354 = vpack.c.b16 %v341, %v340
        %v355 = vpack.c.b16 %v343, %v342
        %v356 = vpack.c.b16 %v345, %v344
        %v357 = vpack.c.b16 %v347, %v346
        %v358 = vpack.c.b16 %v349, %v348
        %vm368 = vcmask 130048
        %v370 = vsel %vm368, %v309, 0
        %v373 = vsel %vm368, %v311, 0
        %375 = vmatprep.subr.bf16.mxu0 0
        %376 = vmatpush1.bf16.msra.mxu0 %v350
        %377 = vmatprep.subr.bf16.mxu0 0
        %378 = vmatpush1.bf16.msra.mxu0 %v351
        %379 = vmatprep.subr.bf16.mxu0 0
        %380 = vmatpush1.bf16.msra.mxu0 %v352
        %381 = vmatprep.subr.bf16.mxu0 0
        %382 = vmatpush1.bf16.msra.mxu0 %v353
        %383 = vmatprep.subr.bf16.mxu0 0
        %384 = vmatpush1.bf16.msra.mxu0 %v354
        %385 = vmatprep.subr.bf16.mxu0 0
        %386 = vmatpush1.bf16.msra.mxu0 %v355
        %387 = vmatprep.subr.bf16.mxu0 0
        %388 = vmatpush1.bf16.msra.mxu0 %v356
        %389 = vmatprep.subr.bf16.mxu0 0
        %390 = vmatpush1.bf16.msra.mxu0 %v357
        %391 = vmatprep.subr.bf16.mxu0 0
        %392 = vmatpush1.bf16.msra.mxu0 %v358
        %393 = vmatprep.subr.bf16.mxu0 0
        %394 = vmatpush1.bf16.msra.mxu0 0
        %395 = vmatprep.subr.bf16.mxu0 0
        %396 = vmatpush1.bf16.msra.mxu0 0
        %397 = vmatprep.subr.bf16.mxu0 0
        %398 = vmatpush1.bf16.msra.mxu0 0
        %399 = vmatprep.subr.bf16.mxu0 0
        %400 = vmatpush1.bf16.msra.mxu0 0
        %401 = vmatprep.subr.bf16.mxu0 0
        %402 = vmatpush1.bf16.msra.mxu0 0
        %403 = vmatprep.subr.bf16.mxu0 0
        %404 = vmatpush1.bf16.msra.mxu0 0
        %405 = vmatprep.subr.bf16.mxu0 0
        %406 = vmatpush1.bf16.msra.mxu0 0
        %407 = vmatprep.mubr.bf16.mxu0 %v370
        %408 = vmatmul.mubr.bf16.gmra.mrb[0].mxu0 %v308
        %v409 = vpop.f32.mrb[0].mxu0
        %v410 = vadd.f32 0.0, %v409
        %v411 = vpop.f32.mrb[0].mxu0
        %v412 = vpop.f32.mrb[0].mxu0
        %v413 = vadd.f32 0.0, %v412
        %v414 = vpop.f32.mrb[0].mxu0
        %415 = vmatprep.mubr.bf16.mxu0 %v373
        %416 = vmatmul.mubr.bf16.gmra.mrb[0].mxu0 %v310
        %v417 = vpop.f32.mrb[0].mxu0
        %v418 = vadd.f32 0.0, %v417
        %v419 = vpop.f32.mrb[0].mxu0
        %v420 = vpop.f32.mrb[0].mxu0
        %v421 = vadd.f32 0.0, %v420
        %v422 = vpop.f32.mrb[0].mxu0
        %423 = vdwg.mxu0
        %424 = vst [vmem:[%s248] sm:$0xff] %v410
        %425 = vst [vmem:[%s248 + $0x8] sm:$0xff] %v413
        %426 = vst [vmem:[%s248 + $0x10] sm:$0xff] %v418
        %427 = vst [vmem:[%s248 + $0x18] sm:$0xff] %v421
        %p428 = scmp.eq.s32.totalorder %s28, 0
        // Predicated region
        $region37: #{tpu_custom_call.1} parent=27 // pred_check
          %p429 = pneg %p428
        $region38: #{tpu_custom_call.1} parent=27 // pred_check_branch
          %431 = sbr.rel (%p429) target = $region40
        $region39: #{tpu_custom_call.1} parent=27 // pred_region
          %vm432 = vcmask 7168
          %433 = vst.msk [vmem:[%s267] sm:$0xff] %vm432, 0.0
          %434 = vst.msk [vmem:[%s267 + $0x8] sm:$0xff] %vm432, 0.0
          %435 = vst.msk [vmem:[%s267 + $0x10] sm:$0xff] %vm432, 0.0
          %436 = vst.msk [vmem:[%s267 + $0x18] sm:$0xff] %vm432, 0.0
          %437 = vst.msk [vmem:[%s272] sm:$0xff] %vm432, 0.0
          %438 = vst.msk [vmem:[%s272 + $0x8] sm:$0xff] %vm432, 0.0
          %439 = vst.msk [vmem:[%s272 + $0x10] sm:$0xff] %vm432, 0.0
          %440 = vst.msk [vmem:[%s272 + $0x18] sm:$0xff] %vm432, 0.0
        $region40: #{tpu_custom_call.1} parent=27 // pred_fallthru
          _
        %v441 = vld [vmem:[%s267] sm:$0xff]
        %v442 = vld [vmem:[%s267 + $0x8] sm:$0xff]
        %v443 = vld [vmem:[%s267 + $0x10] sm:$0xff]
        %v444 = vld [vmem:[%s267 + $0x18] sm:$0xff]
        %445 = vadd.xlane.f32.xlu0 %v410
        %v446 = vpop.xlane.xlu0 %445
        %447 = vadd.xlane.f32.xlu0 %v413
        %v448 = vpop.xlane.xlu0 %447
        %449 = vadd.xlane.f32.xlu0 %v418
        %v450 = vpop.xlane.xlu0 %449
        %451 = vadd.xlane.f32.xlu0 %v421
        %v452 = vpop.xlane.xlu0 %451
        %v453 = vadd.f32 %v441, %v446
        %v454 = vadd.f32 %v442, %v448
        %v455 = vadd.f32 %v443, %v450
        %v456 = vadd.f32 %v444, %v452
        %vm457 = vcmask 7168
        %458 = vst.msk [vmem:[%s267] sm:$0xff] %vm457, %v453
        %459 = vst.msk [vmem:[%s267 + $0x8] sm:$0xff] %vm457, %v454
        %460 = vst.msk [vmem:[%s267 + $0x10] sm:$0xff] %vm457, %v455
        %461 = vst.msk [vmem:[%s267 + $0x18] sm:$0xff] %vm457, %v456
        %v462 = vld [vmem:[%s272] sm:$0xff]
        %v463 = vld [vmem:[%s272 + $0x8] sm:$0xff]
        %v464 = vld [vmem:[%s272 + $0x10] sm:$0xff]
        %v465 = vld [vmem:[%s272 + $0x18] sm:$0xff]
        %v466 = vmul.f32 %v410, %v410
        %v467 = vmul.f32 %v413, %v413
        %v468 = vmul.f32 %v418, %v418
        %v469 = vmul.f32 %v421, %v421
        %470 = vadd.xlane.f32.xlu0 %v466
        %v471 = vpop.xlane.xlu0 %470
        %472 = vadd.xlane.f32.xlu0 %v467
        %v473 = vpop.xlane.xlu0 %472
        %474 = vadd.xlane.f32.xlu0 %v468
        %v475 = vpop.xlane.xlu0 %474
        %476 = vadd.xlane.f32.xlu0 %v469
        %v477 = vpop.xlane.xlu0 %476
        %v478 = vadd.f32 %v462, %v471
        %v479 = vadd.f32 %v463, %v473
        %v480 = vadd.f32 %v464, %v475
        %v481 = vadd.f32 %v465, %v477
        %482 = vst.msk [vmem:[%s272] sm:$0xff] %vm457, %v478
        %483 = vst.msk [vmem:[%s272 + $0x8] sm:$0xff] %vm457, %v479
        %484 = vst.msk [vmem:[%s272 + $0x10] sm:$0xff] %vm457, %v480
        %485 = vst.msk [vmem:[%s272 + $0x18] sm:$0xff] %vm457, %v481
        %s486 = sand.u32 %s94, 1
        %s487 = scalar_lea.sflag [#allocation4], %s486
        %s488 = sand.u32 %s94, 1
        %s489 = smul.addr %s488, 32
        %s490 = scalar_lea.vmem [#allocation7], %s489
        %p491 = scmp.lt.s32.totalorder %s27, 1
        %s492 = scalar_select %p491, %s27, 1
        %s493 = smul.addr %s492, 4
        %s494 = smul.addr %s493, 8
        %s495 = scalar_lea.vmem %s3, %s494
        %p496 = scmp.lt.s32.totalorder %s27, 1
        %s497 = scalar_select %p496, %s27, 1
        %s498 = smul.addr %s497, 4
        %s499 = smul.addr %s498, 8
        %s500 = scalar_lea.vmem %s4, %s499
        // Predicated region
        $region41: #{tpu_custom_call.1} parent=27 // pred_check
          %p501 = pneg %p104
        $region42: #{tpu_custom_call.1} parent=27 // pred_check_branch
          %503 = sbr.rel (%p501) target = $region44
        $region43: #{tpu_custom_call.1} parent=27 // pred_region
          %s505 = ssub.s32 512, 512
          %506 = vsyncadd %s487, %s505
          %s507 = smul.addr %s27, 8
          %s508 = sadd.s32 %s28, %s507
          %s509 = smul.addr %s508, 128
          %s510 = scalar_lea.hbm %s2, %s509
          %s511 = sshll.u32 %s490, 4
          %s512 = int_to_ptr.vmem [resolvable:$true] %s511
          %517 = dma.vmem_to_hbm [thread:$0]  %s512, 512, %s510, %s487, 128, 256, 8
        $region44: #{tpu_custom_call.1} parent=27 // pred_fallthru
          _
        // Predicated region
        $region45: #{tpu_custom_call.1} parent=27 // pred_check
          %p518 = pneg %p130
        $region46: #{tpu_custom_call.1} parent=27 // pred_check_branch
          %520 = sbr.rel (%p518) target = $region48
        $region47: #{tpu_custom_call.1} parent=27 // pred_region
          _
        $region48: #{tpu_custom_call.1} parent=27 // pred_fallthru
          _
        // Predicated region
        $region49: #{tpu_custom_call.1} parent=27 // pred_check
          %p521 = pneg %p156
        $region50: #{tpu_custom_call.1} parent=27 // pred_check_branch
          %523 = sbr.rel (%p521) target = $region52
        $region51: #{tpu_custom_call.1} parent=27 // pred_region
          _
        $region52: #{tpu_custom_call.1} parent=27 // pred_fallthru
          _
      $region28: #{tpu_custom_call.1} parent=5 // pred_fallthru
        _
      %p524 = scmp.le.s32.totalorder 2, %s18
      // Predicated region
      $region53: #{tpu_custom_call.1} parent=5 // pred_check
        %p525 = pneg %p524
      $region54: #{tpu_custom_call.1} parent=5 // pred_check_branch
        %527 = sbr.rel (%p525) target = $region56
      $region55: #{tpu_custom_call.1} parent=5 // pred_region
        %s528 = ssub.s32 %s18, 2
        // Predicated region
        $region57: #{tpu_custom_call.1} parent=55 // pred_check
          %p529 = pneg %p110
        $region58: #{tpu_custom_call.1} parent=55 // pred_check_branch
          %531 = sbr.rel (%p529) target = $region60
        $region59: #{tpu_custom_call.1} parent=55 // pred_region
          %s532 = sand.u32 %s95, 1
          %s533 = scalar_lea.sflag [#allocation4], %s532
          %s534 = sand.u32 %s95, 1
          %s535 = smul.addr %s534, 32
          %s536 = scalar_lea.vmem [#allocation7], %s535
          %537 = dma.done %s533, 512
        $region60: #{tpu_custom_call.1} parent=55 // pred_fallthru
          _
        // Predicated region
        $region61: #{tpu_custom_call.1} parent=55 // pred_check
          %p538 = pneg %p136
        $region62: #{tpu_custom_call.1} parent=55 // pred_check_branch
          %540 = sbr.rel (%p538) target = $region64
        $region63: #{tpu_custom_call.1} parent=55 // pred_region
          %p541 = scmp.lt.s32.totalorder %s29, 1
          %s542 = scalar_select %p541, %s29, 1
          %s543 = smul.addr %s542, 4
          %s544 = smul.addr %s543, 8
          %s545 = scalar_lea.vmem %s3, %s544
        $region64: #{tpu_custom_call.1} parent=55 // pred_fallthru
          _
        // Predicated region
        $region65: #{tpu_custom_call.1} parent=55 // pred_check
          %p546 = pneg %p162
        $region66: #{tpu_custom_call.1} parent=55 // pred_check_branch
          %548 = sbr.rel (%p546) target = $region68
        $region67: #{tpu_custom_call.1} parent=55 // pred_region
          %p549 = scmp.lt.s32.totalorder %s29, 1
          %s550 = scalar_select %p549, %s29, 1
          %s551 = smul.addr %s550, 4
          %s552 = smul.addr %s551, 8
          %s553 = scalar_lea.vmem %s4, %s552
        $region68: #{tpu_custom_call.1} parent=55 // pred_fallthru
          _
      $region56: #{tpu_custom_call.1} parent=5 // pred_fallthru
        _
    $region6: #{tpu_custom_call.1} parent=1 // loop_footer
      %s22 = sadd.s32 1, %s18
    $region7: #{tpu_custom_call.1} parent=1 // loop_footer_branch
      %17 = sbr.rel target = $region3
    $region8: #{tpu_custom_call.1} parent=1 // loop_exit
      _
    %554 = vsyncpa [#allocation3], 1
    %s555 = scalar_lea.sflag [#allocation3], 1
    %556 = vsyncpa %s555, 1
    %557 = vsyncpa [#allocation6], 1
    %558 = vsyncpa [#allocation4], 1
    %s559 = scalar_lea.sflag [#allocation4], 1
    %560 = vsyncpa %s559, 1

</llo_original>
